<compile_context>
chip_gen: v6e
topology: v6e:2x2x1
jax: 0.10.0
libtpu: 0.0.40
codegen_flags: <defaults>
</compile_context>

<pallas_src>
from functools import partial

import jax
import jax.numpy as jnp
from jax.experimental import pallas as pl
from jax.experimental.pallas import tpu as pltpu


def _chip_block_config():
    """Per-generation x-tile byte budget (per buffer) and scoped-VMEM override."""
    block_bytes = 4 << 20          # 8 MiB double-buffered: fits every scoped-VMEM default
    vmem_limit = None
    try:
        info = pltpu.get_tpu_info()
        vmem_cap = getattr(info, "vmem_capacity_bytes", None)
        if vmem_cap is not None and vmem_cap <= (64 << 20):
            # v7x-class (64 MiB VMEM, ~3.2 TB/s HBM): at 4 MiB/tile the fixed
            # ~0.35 us grid-step overhead is a ~20% tax, so use bigger tiles.
            # The 32 MiB scoped default would reject them -> raise explicitly
            # (16 MiB double-buffered x + scratch << 40 MiB << 64 MiB physical).
            block_bytes = 8 << 20
            vmem_limit = 40 << 20
    except Exception:              # no TPU info available (interpret mode, old runtime, ...)
        pass
    return block_bytes, vmem_limit


def _pick_n_tile(N, C, itemsize, block_bytes):
    """Largest 128-aligned spatial tile under the byte budget, preferring one
    that divides N evenly so the ragged-masking path never compiles in."""
    max_nt = max(128, (block_bytes // (C * itemsize)) // 128 * 128)
    if N <= max_nt:
        return N                                  # one full block per batch row
    for nt in range(max_nt, 0, -128):
        if nt < max_nt // 2:                      # don't shrink tiles too far just
            break                                 # to dodge the mask -> ragged path
        if N % nt == 0:
            return nt
    return max_nt                                 # ragged last tile, masked in-kernel


def _gc_pool_kernel(x_ref, wk_ref, acc_ref, m_ref, l_ref, m_sc, l_sc, acc_sc,
                    *, n_total, n_tile, nk_inner, ragged):
    # x_ref : (1, C, Nt)  spatial tile (native dtype), N in lanes / C in sublanes
    # wk_ref: (C, 1)      to_k 1x1-conv weight (f32, resident)
    # acc_ref:(1, 1, C, 1) per-(batch, split) un-normalized pooled partial
    # m_ref : (1, 1, 1, 1) per-(batch, split) running softmax max
    # l_ref : (1, 1, 1, 1) per-(batch, split) running softmax sum
    # m_sc, l_sc : (1, 1) f32 scratch;  acc_sc : (C, 1) f32 scratch
    k = pl.program_id(2)

    @pl.when(k == 0)
    def _():
        m_sc[...] = jnp.full_like(m_sc, -jnp.inf)
        l_sc[...] = jnp.zeros_like(l_sc)
        acc_sc[...] = jnp.zeros_like(acc_sc)

    # Upcast in-register: x arrives in its source dtype (bf16/f16/f32); all
    # arithmetic below is f32 (v5e VPU has no bf16 ALUs, accumulators need f32).
    x = x_ref[0].astype(jnp.float32)          # (C, Nt)
    wk = wk_ref[...]                          # (C, 1)

    if ragged:
        # Only compiled when no evenly-dividing tile exists.  The overhanging
        # region of the last block is uninitialized VMEM (may be non-finite),
        # so x must be zeroed there: 0 * NaN would poison the pooled sums.
        t = pl.program_id(1) * nk_inner + k                      # global tile index
        pos = t * n_tile + jax.lax.broadcasted_iota(jnp.int32, (1, n_tile), 1)
        valid = pos < n_total                                    # (1, Nt)
        x = jnp.where(valid, x, 0.0)

    # to_k 1x1 conv: logit[n] = sum_c wk[c] * x[c, n]   (VPU mul + sublane reduce).
    # Bias dropped: softmax is shift-invariant, result is identical.
    logits = jnp.sum(x * wk, axis=0, keepdims=True)              # (1, Nt)
    if ragged:
        logits = jnp.where(valid, logits, -1e30)                 # padded lanes -> p == 0

    # --- streaming (online) softmax + pooled accumulation --------------------
    m_prev = m_sc[...]                                           # (1, 1)
    m_new = jnp.maximum(m_prev, jnp.max(logits, axis=1, keepdims=True))
    alpha = jnp.exp(m_prev - m_new)                              # (1, 1)
    p = jnp.exp(logits - m_new)                                  # (1, Nt), exactly 0 on pad
    l_sc[...] = alpha * l_sc[...] + jnp.sum(p, axis=1, keepdims=True)
    # Pooled contribution: explicit broadcast-mul + lane reduce -> (C, 1).
    # Keeps the contraction off the MXU (width-1 output would make MXU feed time
    # exceed the tile's DMA) and guarantees no full-tile XLU transpose of x.
    contrib = jnp.sum(x * p, axis=1, keepdims=True)              # (C, 1)
    acc_sc[...] = alpha * acc_sc[...] + contrib
    m_sc[...] = m_new

    @pl.when(k == pl.num_programs(2) - 1)
    def _():
        acc_ref[...] = acc_sc[...].reshape(acc_ref.shape)        # (1,1,C,1), free reshape
        m_ref[...] = m_sc[...].reshape(m_ref.shape)
        l_ref[...] = l_sc[...].reshape(l_ref.shape)


def global_context_sl(x_nchw, params, *, n_tile=None, n_splits=None):
    """x_nchw: (B, C_in, H, W), any float dtype. Returns (B, ch_out, 1, 1) f32."""
    wk, bk, w1, b1, w2, b2 = params    # bk intentionally unused (shift-invariant softmax)
    del bk
    B, C, H, W = x_nchw.shape
    N = H * W
    CO = w2.shape[1]

    # Native layout and dtype: (B,C,H,W) -> (B,C,N) is a free row-major view
    # (same ordering as torch .flatten(2)); no cast, no transpose, no extra HBM pass.
    x = x_nchw.reshape(B, C, N)
    itemsize = x.dtype.itemsize

    block_bytes, vmem_limit = _chip_block_config()
    if n_tile is None:
        n_tile = _pick_n_tile(N, C, itemsize, block_bytes)
    else:
        assert n_tile == N or n_tile % 128 == 0, "n_tile must be 128-aligned or == N"
    nk_total = -(-N // n_tile)
    ragged = (N % n_tile) != 0

    if n_splits is None:
        # On multi-TensorCore chips (v7x) the batch axis alone cannot keep both
        # cores busy when B == 1: split the spatial axis over a second parallel
        # grid axis.  Same math / harmless on single-core chips.
        n_splits = 2 if (B == 1 and nk_total >= 2) else 1
    if n_splits < 1 or nk_total % n_splits != 0:
        n_splits = 1          # only split on tile boundaries (never an empty split)
    nk_inner = nk_total // n_splits

    kernel = partial(_gc_pool_kernel, n_total=N, n_tile=n_tile,
                     nk_inner=nk_inner, ragged=ragged)

    cp_kwargs = dict(dimension_semantics=("parallel", "parallel", "arbitrary"))
    if vmem_limit is not None:
        cp_kwargs["vmem_limit_bytes"] = vmem_limit

    cost = pl.CostEstimate(
        flops=4 * B * C * N,                 # to_k conv + pooled contraction
        transcendentals=2 * B * N,           # exp in the online softmax
        bytes_accessed=B * C * N * itemsize + C * 4 + B * n_splits * (C + 2) * 4,
    )

    acc_p, m_p, l_p = pl.pallas_call(
        kernel,
        out_shape=(
            jax.ShapeDtypeStruct((B, n_splits, C, 1), jnp.float32),
            jax.ShapeDtypeStruct((B, n_splits, 1, 1), jnp.float32),
            jax.ShapeDtypeStruct((B, n_splits, 1, 1), jnp.float32),
        ),
        grid_spec=pltpu.PrefetchScalarGridSpec(
            num_scalar_prefetch=0,
            grid=(B, n_splits, nk_inner),                    # reduction axis last
            in_specs=[
                pl.BlockSpec((1, C, n_tile),
                             lambda b, s, k: (b, 0, s * nk_inner + k)),   # x tile
                pl.BlockSpec((C, 1), lambda b, s, k: (0, 0)),             # wk (resident)
            ],
            out_specs=[
                pl.BlockSpec((1, 1, C, 1), lambda b, s, k: (b, s, 0, 0)),
                pl.BlockSpec((1, 1, 1, 1), lambda b, s, k: (b, s, 0, 0)),
                pl.BlockSpec((1, 1, 1, 1), lambda b, s, k: (b, s, 0, 0)),
            ],
            scratch_shapes=[
                pltpu.VMEM((1, 1), jnp.float32),    # running max
                pltpu.VMEM((1, 1), jnp.float32),    # running sum
                pltpu.VMEM((C, 1), jnp.float32),    # pooled accumulator
            ],
        ),
        compiler_params=pltpu.CompilerParams(**cp_kwargs),
        cost_estimate=cost,
    )(x, wk.astype(jnp.float32))

    # Log-sum-exp merge of the per-split partials (degenerates to acc / l for S=1).
    acc = acc_p[..., 0]                                  # (B, S, C)
    m = m_p[..., 0, 0]                                   # (B, S)
    l = l_p[..., 0, 0]                                   # (B, S)
    m_max = jnp.max(m, axis=1, keepdims=True)            # (B, 1)
    w = jnp.exp(m - m_max)                               # (B, S)
    pooled = (jnp.sum(acc * w[..., None], axis=1)
              / jnp.sum(l * w, axis=1, keepdims=True))   # (B, C)

    # Tail MLP hoisted to plain JAX: one batched matmul pair over (B, C) is
    # negligible in XLA and avoids width-1 matmuls / narrow stores in-kernel.
    h = pooled @ w1 + b1
    h = jnp.where(h >= 0, h, 0.1 * h)                    # LeakyReLU(0.1)
    y = jax.nn.sigmoid(h @ w2 + b2)
    return y.reshape(B, CO, 1, 1)


def _reference(x_nchw, params):
    """Pure-JAX reference mirroring the PyTorch forward (bias included)."""
    wk, bk, w1, b1, w2, b2 = params
    B, C, H, W = x_nchw.shape
    xf = x_nchw.astype(jnp.float32).reshape(B, C, H * W)       # (B, C, N)
    logits = jnp.einsum('bcn,cq->bqn', xf, wk) + bk[0]         # (B, 1, N)
    attn = jax.nn.softmax(logits, axis=-1)
    pooled = jnp.einsum('bqn,bcn->bcq', attn, xf)[..., 0]      # (B, C)
    h = pooled @ w1 + b1
    h = jnp.where(h >= 0, h, 0.1 * h)
    y = jax.nn.sigmoid(h @ w2 + b2)
    return y.reshape(B, -1, 1, 1)


def make_params(key, ch_in, ch_out):
    ch_inter = max(3, ch_out // 2)
    ks = jax.random.split(key, 6)
    wk = jax.random.normal(ks[0], (ch_in, 1), jnp.float32) * 0.2
    bk = jax.random.normal(ks[1], (1,), jnp.float32) * 0.1
    w1 = jax.random.normal(ks[2], (ch_in, ch_inter), jnp.float32) * 0.2
    b1 = jax.random.normal(ks[3], (ch_inter,), jnp.float32) * 0.1
    w2 = jax.random.normal(ks[4], (ch_inter, ch_out), jnp.float32) * 0.2
    b2 = jax.random.normal(ks[5], (ch_out,), jnp.float32) * 0.1
    return (wk, bk, w1, b1, w2, b2)


if __name__ == "__main__":
    key = jax.random.PRNGKey(0)

    # --- Test 1: auto tiling (single spatial block per batch row), f32 -------
    B, C_IN, H, W, CH_OUT = 2, 4, 16, 16, 8
    kx, kp, key = jax.random.split(key, 3)
    x = jax.random.normal(kx, (B, C_IN, H, W), jnp.float32)
    params = make_params(kp, C_IN, CH_OUT)

    y = jax.block_until_ready(jax.jit(global_context_sl)(x, params))
    y_ref = jax.block_until_ready(_reference(x, params))
    assert y.shape == (B, CH_OUT, 1, 1), y.shape
    assert jnp.allclose(y, y_ref, atol=1e-5, rtol=1e-5), (
        float(jnp.max(jnp.abs(y - y_ref))))

    # --- Test 2: streaming online-softmax path (N=256 as 2 tiles) ------------
    y2 = jax.block_until_ready(
        jax.jit(partial(global_context_sl, n_tile=128))(x, params))
    assert jnp.allclose(y2, y_ref, atol=1e-5, rtol=1e-5), (
        float(jnp.max(jnp.abs(y2 - y_ref))))

    # --- Test 3: ragged last spatial tile (N=144, Nt=128) exercises masking --
    B3, C3, H3, W3, CO3 = 3, 8, 12, 12, 6
    kx3, kp3, key = jax.random.split(key, 3)
    x3 = jax.random.normal(kx3, (B3, C3, H3, W3), jnp.float32)
    params3 = make_params(kp3, C3, CO3)
    y3 = jax.block_until_ready(
        jax.jit(partial(global_context_sl, n_tile=128))(x3, params3))
    y3_ref = jax.block_until_ready(_reference(x3, params3))
    assert y3.shape == (B3, CO3, 1, 1), y3.shape
    assert jnp.allclose(y3, y3_ref, atol=1e-5, rtol=1e-5), (
        float(jnp.max(jnp.abs(y3 - y3_ref))))

    # --- Test 4: B=1 spatial split across 2 parallel grid axes (dual-TC path) -
    B4, C4, H4, W4, CO4 = 1, 8, 32, 32, 4
    kx4, kp4, key = jax.random.split(key, 3)
    x4 = jax.random.normal(kx4, (B4, C4, H4, W4), jnp.float32)
    params4 = make_params(kp4, C4, CO4)
    y4 = jax.block_until_ready(
        jax.jit(partial(global_context_sl, n_tile=128, n_splits=2))(x4, params4))
    y4_ref = jax.block_until_ready(_reference(x4, params4))
    assert jnp.allclose(y4, y4_ref, atol=1e-5, rtol=1e-5), (
        float(jnp.max(jnp.abs(y4 - y4_ref))))

    # --- Test 5: split + ragged tile in the second split (B=1, N=144) --------
    B5, C5, H5, W5, CO5 = 1, 8, 12, 12, 6
    kx5, kp5, key = jax.random.split(key, 3)
    x5 = jax.random.normal(kx5, (B5, C5, H5, W5), jnp.float32)
    params5 = make_params(kp5, C5, CO5)
    y5 = jax.block_until_ready(
        jax.jit(partial(global_context_sl, n_tile=128))(x5, params5))  # auto n_splits=2
    y5_ref = jax.block_until_ready(_reference(x5, params5))
    assert jnp.allclose(y5, y5_ref, atol=1e-5, rtol=1e-5), (
        float(jnp.max(jnp.abs(y5 - y5_ref))))

    # --- Test 6: native bf16 input consumed directly (half the HBM bytes) ----
    x_bf16 = x.astype(jnp.bfloat16)
    y6 = jax.block_until_ready(jax.jit(global_context_sl)(x_bf16, params))
    y6_ref = jax.block_until_ready(_reference(x_bf16, params))  # f32 math on same bf16 values
    assert jnp.allclose(y6, y6_ref, atol=1e-4, rtol=1e-4), (
        float(jnp.max(jnp.abs(y6 - y6_ref))))

    print("KERNEL_OK")
</pallas_src>

<mosaic_0001>
module attributes {stable_mosaic.version = 11 : i64} {
  func.func @_gc_pool_kernel(%arg0: i32, %arg1: i32, %arg2: i32, %arg3: memref<1x4x256xf32, #tpu.memory_space<vmem>>, %arg4: memref<4x1xf32, #tpu.memory_space<vmem>>, %arg5: memref<1x1x4x1xf32, #tpu.memory_space<vmem>>, %arg6: memref<1x1x1x1xf32, #tpu.memory_space<vmem>>, %arg7: memref<1x1x1x1xf32, #tpu.memory_space<vmem>>, %arg8: memref<1x1xf32, #tpu.memory_space<vmem>>, %arg9: memref<1x1xf32, #tpu.memory_space<vmem>>, %arg10: memref<4x1xf32, #tpu.memory_space<vmem>>) attributes {dimension_semantics = [#tpu.dimension_semantics<parallel>, #tpu.dimension_semantics<parallel>, #tpu.dimension_semantics<arbitrary>], iteration_bounds = array<i64: 2, 1, 1>, scalar_prefetch = 0 : i64, scratch_operands = 3 : i64, tpu.core_type = #tpu.core_type<tc>, window_params = [{transform_indices = @transform_0, window_bounds = array<i64: 1, 4, 256>}, {pipeline_mode = #tpu.pipeline_mode<synchronous>, transform_indices = @transform_1, window_bounds = array<i64: 4, 1>}, {transform_indices = @transform_2, window_bounds = array<i64: 1, 1, 4, 1>}, {transform_indices = @transform_3, window_bounds = array<i64: 1, 1, 1, 1>}, {transform_indices = @transform_4, window_bounds = array<i64: 1, 1, 1, 1>}]} {
    %c0_i32 = arith.constant 0 : i32
    %0 = arith.cmpi eq, %arg2, %c0_i32 : i32
    %1 = arith.extui %0 : i1 to i32
    %c0_i32_0 = arith.constant 0 : i32
    %2 = arith.cmpi ne, %1, %c0_i32_0 : i32
    scf.if %2 {
      %cst_22 = arith.constant 0xFF800000 : f32
      %38 = vector.broadcast %cst_22 : f32 to vector<1x1xf32>
      %c0_23 = arith.constant 0 : index
      %c0_24 = arith.constant 0 : index
      %39 = vector.load %arg8[%c0_23, %c0_24] : memref<1x1xf32, #tpu.memory_space<vmem>>, vector<1x1xf32>
      tpu.vector_store %arg8[%c0_23, %c0_24], %38 {strides = array<i32>} : memref<1x1xf32, #tpu.memory_space<vmem>>, vector<1x1xf32>,
      %cst_25 = arith.constant 0.000000e+00 : f32
      %40 = vector.broadcast %cst_25 : f32 to vector<1x1xf32>
      %c0_26 = arith.constant 0 : index
      %c0_27 = arith.constant 0 : index
      %41 = vector.load %arg9[%c0_26, %c0_27] : memref<1x1xf32, #tpu.memory_space<vmem>>, vector<1x1xf32>
      tpu.vector_store %arg9[%c0_26, %c0_27], %40 {strides = array<i32>} : memref<1x1xf32, #tpu.memory_space<vmem>>, vector<1x1xf32>,
      %cst_28 = arith.constant 0.000000e+00 : f32
      %42 = vector.broadcast %cst_28 : f32 to vector<4x1xf32>
      %c0_29 = arith.constant 0 : index
      %c0_30 = arith.constant 0 : index
      %43 = vector.load %arg10[%c0_29, %c0_30] : memref<4x1xf32, #tpu.memory_space<vmem>>, vector<4x1xf32>
      tpu.vector_store %arg10[%c0_29, %c0_30], %42 {strides = array<i32>} : memref<4x1xf32, #tpu.memory_space<vmem>>, vector<4x1xf32>,
    } else {
    }
    %c0 = arith.constant 0 : index
    %c0_1 = arith.constant 0 : index
    %c0_2 = arith.constant 0 : index
    %3 = vector.load %arg3[%c0, %c0_1, %c0_2] : memref<1x4x256xf32, #tpu.memory_space<vmem>>, vector<1x4x256xf32>
    %4 = vector.shape_cast %3 : vector<1x4x256xf32> to vector<4x256xf32>
    %c0_3 = arith.constant 0 : index
    %c0_4 = arith.constant 0 : index
    %5 = vector.load %arg4[%c0_3, %c0_4] : memref<4x1xf32, #tpu.memory_space<vmem>>, vector<4x1xf32>
    %6 = vector.broadcast %5 : vector<4x1xf32> to vector<4x256xf32>
    %7 = arith.mulf %4, %6 : vector<4x256xf32>
    %cst = arith.constant dense<0.000000e+00> : vector<256xf32>
    %8 = vector.multi_reduction <add>, %7, %cst [0] : vector<4x256xf32> to vector<256xf32>
    %9 = vector.shape_cast %8 : vector<256xf32> to vector<1x256xf32>
    %c0_5 = arith.constant 0 : index
    %c0_6 = arith.constant 0 : index
    %10 = vector.load %arg8[%c0_5, %c0_6] : memref<1x1xf32, #tpu.memory_space<vmem>>, vector<1x1xf32>
    %cst_7 = arith.constant dense<0xFF800000> : vector<1xf32>
    %11 = vector.multi_reduction <maximumf>, %9, %cst_7 [1] : vector<1x256xf32> to vector<1xf32>
    %12 = vector.shape_cast %11 : vector<1xf32> to vector<1x1xf32>
    %13 = arith.maximumf %10, %12 : vector<1x1xf32>
    %14 = arith.subf %10, %13 : vector<1x1xf32>
    %15 = math.exp %14 : vector<1x1xf32>
    %16 = vector.broadcast %13 : vector<1x1xf32> to vector<1x256xf32>
    %17 = arith.subf %9, %16 : vector<1x256xf32>
    %18 = math.exp %17 : vector<1x256xf32>
    %c0_8 = arith.constant 0 : index
    %c0_9 = arith.constant 0 : index
    %19 = vector.load %arg9[%c0_8, %c0_9] : memref<1x1xf32, #tpu.memory_space<vmem>>, vector<1x1xf32>
    %20 = arith.mulf %15, %19 : vector<1x1xf32>
    %cst_10 = arith.constant dense<0.000000e+00> : vector<1xf32>
    %21 = vector.multi_reduction <add>, %18, %cst_10 [1] : vector<1x256xf32> to vector<1xf32>
    %22 = vector.shape_cast %21 : vector<1xf32> to vector<1x1xf32>
    %23 = arith.addf %20, %22 : vector<1x1xf32>
    %c0_11 = arith.constant 0 : index
    %c0_12 = arith.constant 0 : index
    %24 = vector.load %arg9[%c0_11, %c0_12] : memref<1x1xf32, #tpu.memory_space<vmem>>, vector<1x1xf32>
    tpu.vector_store %arg9[%c0_11, %c0_12], %23 {strides = array<i32>} : memref<1x1xf32, #tpu.memory_space<vmem>>, vector<1x1xf32>,
    %25 = vector.broadcast %18 : vector<1x256xf32> to vector<4x256xf32>
    %26 = arith.mulf %4, %25 : vector<4x256xf32>
    %cst_13 = arith.constant dense<0.000000e+00> : vector<4xf32>
    %27 = vector.multi_reduction <add>, %26, %cst_13 [1] : vector<4x256xf32> to vector<4xf32>
    %28 = vector.shape_cast %27 : vector<4xf32> to vector<4x1xf32>
    %c0_14 = arith.constant 0 : index
    %c0_15 = arith.constant 0 : index
    %29 = vector.load %arg10[%c0_14, %c0_15] : memref<4x1xf32, #tpu.memory_space<vmem>>, vector<4x1xf32>
    %30 = vector.broadcast %15 : vector<1x1xf32> to vector<4x1xf32>
    %31 = arith.mulf %30, %29 : vector<4x1xf32>
    %32 = arith.addf %31, %28 : vector<4x1xf32>
    %c0_16 = arith.constant 0 : index
    %c0_17 = arith.constant 0 : index
    %33 = vector.load %arg10[%c0_16, %c0_17] : memref<4x1xf32, #tpu.memory_space<vmem>>, vector<4x1xf32>
    tpu.vector_store %arg10[%c0_16, %c0_17], %32 {strides = array<i32>} : memref<4x1xf32, #tpu.memory_space<vmem>>, vector<4x1xf32>,
    %c0_18 = arith.constant 0 : index
    %c0_19 = arith.constant 0 : index
    %34 = vector.load %arg8[%c0_18, %c0_19] : memref<1x1xf32, #tpu.memory_space<vmem>>, vector<1x1xf32>
    tpu.vector_store %arg8[%c0_18, %c0_19], %13 {strides = array<i32>} : memref<1x1xf32, #tpu.memory_space<vmem>>, vector<1x1xf32>,
    %c0_i32_20 = arith.constant 0 : i32
    %35 = arith.cmpi eq, %arg2, %c0_i32_20 : i32
    %36 = arith.extui %35 : i1 to i32
    %c0_i32_21 = arith.constant 0 : i32
    %37 = arith.cmpi ne, %36, %c0_i32_21 : i32
    scf.if %37 {
      %c0_22 = arith.constant 0 : index
      %c0_23 = arith.constant 0 : index
      %38 = vector.load %arg10[%c0_22, %c0_23] : memref<4x1xf32, #tpu.memory_space<vmem>>, vector<4x1xf32>
      %39 = vector.shape_cast %38 : vector<4x1xf32> to vector<1x1x4x1xf32>
      %c0_24 = arith.constant 0 : index
      %c0_25 = arith.constant 0 : index
      %c0_26 = arith.constant 0 : index
      %c0_27 = arith.constant 0 : index
      %40 = vector.load %arg5[%c0_24, %c0_25, %c0_26, %c0_27] : memref<1x1x4x1xf32, #tpu.memory_space<vmem>>, vector<1x1x4x1xf32>
      tpu.vector_store %arg5[%c0_24, %c0_25, %c0_26, %c0_27], %39 {strides = array<i32>} : memref<1x1x4x1xf32, #tpu.memory_space<vmem>>, vector<1x1x4x1xf32>,
      %c0_28 = arith.constant 0 : index
      %c0_29 = arith.constant 0 : index
      %41 = vector.load %arg8[%c0_28, %c0_29] : memref<1x1xf32, #tpu.memory_space<vmem>>, vector<1x1xf32>
      %42 = vector.shape_cast %41 : vector<1x1xf32> to vector<1x1x1x1xf32>
      %c0_30 = arith.constant 0 : index
      %c0_31 = arith.constant 0 : index
      %c0_32 = arith.constant 0 : index
      %c0_33 = arith.constant 0 : index
      %43 = vector.load %arg6[%c0_30, %c0_31, %c0_32, %c0_33] : memref<1x1x1x1xf32, #tpu.memory_space<vmem>>, vector<1x1x1x1xf32>
      tpu.vector_store %arg6[%c0_30, %c0_31, %c0_32, %c0_33], %42 {strides = array<i32>} : memref<1x1x1x1xf32, #tpu.memory_space<vmem>>, vector<1x1x1x1xf32>,
      %c0_34 = arith.constant 0 : index
      %c0_35 = arith.constant 0 : index
      %44 = vector.load %arg9[%c0_34, %c0_35] : memref<1x1xf32, #tpu.memory_space<vmem>>, vector<1x1xf32>
      %45 = vector.shape_cast %44 : vector<1x1xf32> to vector<1x1x1x1xf32>
      %c0_36 = arith.constant 0 : index
      %c0_37 = arith.constant 0 : index
      %c0_38 = arith.constant 0 : index
      %c0_39 = arith.constant 0 : index
      %46 = vector.load %arg7[%c0_36, %c0_37, %c0_38, %c0_39] : memref<1x1x1x1xf32, #tpu.memory_space<vmem>>, vector<1x1x1x1xf32>
      tpu.vector_store %arg7[%c0_36, %c0_37, %c0_38, %c0_39], %45 {strides = array<i32>} : memref<1x1x1x1xf32, #tpu.memory_space<vmem>>, vector<1x1x1x1xf32>,
    } else {
    }
    return
  }
  func.func @transform_0(%arg0: i32, %arg1: i32, %arg2: i32) -> (i32, i32, i32) {
    %c1_i32 = arith.constant 1 : i32
    %0 = arith.muli %arg1, %c1_i32 : i32
    %1 = arith.addi %0, %arg2 : i32
    %c0_i32 = arith.constant 0 : i32
    %c0_i32_0 = arith.constant 0 : i32
    return %arg0, %c0_i32, %1 : i32, i32, i32
  }
  func.func @transform_1(%arg0: i32, %arg1: i32, %arg2: i32) -> (i32, i32) {
    %c0_i32 = arith.constant 0 : i32
    %c0_i32_0 = arith.constant 0 : i32
    %c0_i32_1 = arith.constant 0 : i32
    return %c0_i32, %c0_i32_0 : i32, i32
  }
  func.func @transform_2(%arg0: i32, %arg1: i32, %arg2: i32) -> (i32, i32, i32, i32) {
    %c0_i32 = arith.constant 0 : i32
    %c0_i32_0 = arith.constant 0 : i32
    %c0_i32_1 = arith.constant 0 : i32
    return %arg0, %arg1, %c0_i32, %c0_i32_0 : i32, i32, i32, i32
  }
  func.func @transform_3(%arg0: i32, %arg1: i32, %arg2: i32) -> (i32, i32, i32, i32) {
    %c0_i32 = arith.constant 0 : i32
    %c0_i32_0 = arith.constant 0 : i32
    %c0_i32_1 = arith.constant 0 : i32
    return %arg0, %arg1, %c0_i32, %c0_i32_0 : i32, i32, i32, i32
  }
  func.func @transform_4(%arg0: i32, %arg1: i32, %arg2: i32) -> (i32, i32, i32, i32) {
    %c0_i32 = arith.constant 0 : i32
    %c0_i32_0 = arith.constant 0 : i32
    %c0_i32_1 = arith.constant 0 : i32
    return %arg0, %arg1, %c0_i32, %c0_i32_0 : i32, i32, i32, i32
  }
}

</mosaic_0001>

<llo_original>
// kernel: mul.14
$region0: #{mul.14}
  #allocation0 [shape = 's32[1]{0}', space=sflag, size = 0x4, scoped, tag = 'scoped memory for mul.14']
  %s0 = inlined_call_operand.vmem [shape: f32[2], index: 0, kind: input, shape index: {}]
  %s1 = inlined_call_operand.vmem [shape: f32[2], index: 1, kind: input, shape index: {}]
  %s2 = inlined_call_operand.vmem [shape: f32[2], index: 2, kind: output, shape index: {}]
  %v3 = vld [vmem:[%s0] sm:$0x1]
  %v4 = vld [vmem:[%s1] sm:$0x1]
  %5 = xla_tuple %v3, %v4
  %6 = xla_tuple %5
  %v7 = vmul.f32 %v3, %v4
  %8 = xla_tuple %v7
  %9 = vst [vmem:[%s2] sm:$0x1] %v7

// kernel: global_context_sl.1
$region0: #{global_context_sl.1}
  #allocation0 [shape = 'u32[]', space=smem, size = 0x4, offset = 0x4, fixed_abs, tag = 'smem constant byte address 0x4 - core index']
  #allocation1 [shape = 'u32[144,128]{1,0:T(1,128)}', space=vmem, size = 0x12000, scoped, tag = 'internal scratch']
  #allocation2 [shape = 'f32[1,1]{1,0:T(1,128)}', space=vmem, size = 0x200, scoped, tag = 'scratch operand']
  #allocation3 [shape = 'f32[1,1]{1,0:T(1,128)}', space=vmem, size = 0x200, scoped, tag = 'scratch operand']
  #allocation4 [shape = 'f32[4,1]{1,0:T(4,128)}', space=vmem, size = 0x800, scoped, tag = 'scratch operand']
  %s0 = inlined_call_operand.vmem [shape: f32[2,4,256], index: 0, kind: input, shape index: {}]
  %s1 = inlined_call_operand.vmem [shape: f32[4,1], index: 1, kind: input, shape index: {}]
  %s2 = inlined_call_operand.vmem [shape: f32[2,1,4,1], index: 2, kind: output, shape index: {0}]
  %s3 = inlined_call_operand.vmem [shape: f32[2,1,1,1], index: 3, kind: output, shape index: {1}]
  %s4 = inlined_call_operand.vmem [shape: f32[2,1,1,1], index: 4, kind: output, shape index: {2}]
  %5 = xla_tuple %s2, %s3, %s4
  %s6 = sld [smem:[#allocation0]]
  $region65: #{global_context_sl.1} parent=0
    _
  %s8 = ssub.s32 1, %s6
  %s9 = scalar_select 0, %s8, %s6
  loop: start=0, step=1, limit=4
  $region2: #{global_context_sl.1} parent=0 // loop_pre_header
    _
  $region3: #{global_context_sl.1} parent=0 // loop_header
    %s11 = sphi 0, %s15
    %p12 = scmp.ge.s32.totalorder %s11, 4
    %s18 = sphi 0, %s37
    %s19 = sphi 0, %s33
    %s20 = sphi 0, %s29
    %s21 = sphi 0, %s18
    %s22 = sphi 0, %s19
    %s23 = sphi 0, %s20
    %s24 = sphi 0, %s21
    %s25 = sphi 0, %s22
    %s26 = sphi 0, %s23
    %s44 = sphi 0, %s46
    %s47 = sphi 0, %s44
    %s48 = sphi 0, %s47
    %s64 = sphi 0, %s48
    %s68 = sphi 0, %s68
    %s70 = sphi 0, %s68
    %s71 = sphi 0, %s70
    %s85 = sphi 0, %s71
    %s93 = sphi 0, %s95
    %s96 = sphi 0, %s93
    %s97 = sphi 0, %s96
    %s113 = sphi 0, %s97
    %s121 = sphi 0, %s123
    %s124 = sphi 0, %s121
    %s125 = sphi 0, %s124
    %s141 = sphi 0, %s125
    %s149 = sphi 0, %s151
    %s152 = sphi 0, %s149
    %s153 = sphi 0, %s152
    %s169 = sphi 0, %s153
  $region4: #{global_context_sl.1} parent=0 // loop_header_branch
    %14 = sbr.rel (%p12) target = $region8
  $region5: #{global_context_sl.1} parent=0 // loop_body
    %s16 = ssub.s32 %s11, 1
    %s17 = ssub.s32 %s11, 2
    %s27 = sadd.s32 1, %s20
    %p28 = scmp.ge.s32.totalorder %s27, 1
    %s29 = scalar_select %p28, 0, %s27
    %s30 = sadd.s32 1, %s19
    %s31 = scalar_select %p28, %s30, %s19
    %p32 = scmp.ge.s32.totalorder %s31, 1
    %s33 = scalar_select %p32, 0, %s31
    %s34 = sadd.s32 1, %s18
    %s35 = scalar_select %p32, %s34, %s18
    %p36 = scmp.ge.s32.totalorder %s35, 2
    %s37 = scalar_select %p36, 0, %s35
    %s38 = sadd.s32 %s19, %s20
    %s39 = sadd.s32 %s33, %s29
    %s40 = ssub.s32 %s18, %s37
    %s41 = ssub.s32 %s38, %s39
    %s42 = sor.u32 %s40, %s41
    %p43 = scmp.eq.s32.totalorder %s42, 0
    %s45 = sadd.s32 %s44, 1
    %s46 = scalar_select %p43, %s44, %s45
    %p49 = pneg %p43
    %p50 = scmp.eq.s32.totalorder %s11, 1
    %p51 = por %p49, %p50
    %p52 = scmp.ne.s32.totalorder %s44, %s47
    %p53 = scmp.eq.s32.totalorder %s11, 0
    %p54 = por %p52, %p53
    %p55 = scmp.ne.s32.totalorder %s44, %s47
    %p56 = scmp.eq.s32.totalorder %s16, 1
    %p57 = por %p55, %p56
    %p58 = scmp.ne.s32.totalorder %s47, %s48
    %p59 = scmp.eq.s32.totalorder %s16, 0
    %p60 = por %p58, %p59
    %p61 = scmp.ne.s32.totalorder %s47, %s48
    %p62 = scmp.eq.s32.totalorder %s17, 1
    %p63 = por %p61, %p62
    %p65 = scmp.ne.s32.totalorder %s48, %s64
    %p66 = scmp.eq.s32.totalorder %s17, 0
    %p67 = por %p65, %p66
    %s69 = sadd.s32 %s68, 1
    %p72 = scmp.eq.s32.totalorder %s11, 1
    %p73 = scmp.ne.s32.totalorder %s68, %s70
    %p74 = scmp.eq.s32.totalorder %s11, 0
    %p75 = por %p73, %p74
    %p76 = scmp.ne.s32.totalorder %s68, %s70
    %p77 = scmp.eq.s32.totalorder %s16, 1
    %p78 = por %p76, %p77
    %p79 = scmp.ne.s32.totalorder %s70, %s71
    %p80 = scmp.eq.s32.totalorder %s16, 0
    %p81 = por %p79, %p80
    %p82 = scmp.ne.s32.totalorder %s70, %s71
    %p83 = scmp.eq.s32.totalorder %s17, 1
    %p84 = por %p82, %p83
    %p86 = scmp.ne.s32.totalorder %s71, %s85
    %p87 = scmp.eq.s32.totalorder %s17, 0
    %p88 = por %p86, %p87
    %s89 = ssub.s32 %s18, %s37
    %s90 = ssub.s32 %s19, %s33
    %s91 = sor.u32 %s89, %s90
    %p92 = scmp.eq.s32.totalorder %s91, 0
    %s94 = sadd.s32 %s93, 1
    %s95 = scalar_select %p92, %s93, %s94
    %p98 = pneg %p92
    %p99 = scmp.eq.s32.totalorder %s11, 1
    %p100 = por %p98, %p99
    %p101 = scmp.ne.s32.totalorder %s93, %s96
    %p102 = scmp.eq.s32.totalorder %s11, 0
    %p103 = por %p101, %p102
    %p104 = scmp.ne.s32.totalorder %s93, %s96
    %p105 = scmp.eq.s32.totalorder %s16, 1
    %p106 = por %p104, %p105
    %p107 = scmp.ne.s32.totalorder %s96, %s97
    %p108 = scmp.eq.s32.totalorder %s16, 0
    %p109 = por %p107, %p108
    %p110 = scmp.ne.s32.totalorder %s96, %s97
    %p111 = scmp.eq.s32.totalorder %s17, 1
    %p112 = por %p110, %p111
    %p114 = scmp.ne.s32.totalorder %s97, %s113
    %p115 = scmp.eq.s32.totalorder %s17, 0
    %p116 = por %p114, %p115
    %s117 = ssub.s32 %s18, %s37
    %s118 = ssub.s32 %s19, %s33
    %s119 = sor.u32 %s117, %s118
    %p120 = scmp.eq.s32.totalorder %s119, 0
    %s122 = sadd.s32 %s121, 1
    %s123 = scalar_select %p120, %s121, %s122
    %p126 = pneg %p120
    %p127 = scmp.eq.s32.totalorder %s11, 1
    %p128 = por %p126, %p127
    %p129 = scmp.ne.s32.totalorder %s121, %s124
    %p130 = scmp.eq.s32.totalorder %s11, 0
    %p131 = por %p129, %p130
    %p132 = scmp.ne.s32.totalorder %s121, %s124
    %p133 = scmp.eq.s32.totalorder %s16, 1
    %p134 = por %p132, %p133
    %p135 = scmp.ne.s32.totalorder %s124, %s125
    %p136 = scmp.eq.s32.totalorder %s16, 0
    %p137 = por %p135, %p136
    %p138 = scmp.ne.s32.totalorder %s124, %s125
    %p139 = scmp.eq.s32.totalorder %s17, 1
    %p140 = por %p138, %p139
    %p142 = scmp.ne.s32.totalorder %s125, %s141
    %p143 = scmp.eq.s32.totalorder %s17, 0
    %p144 = por %p142, %p143
    %s145 = ssub.s32 %s18, %s37
    %s146 = ssub.s32 %s19, %s33
    %s147 = sor.u32 %s145, %s146
    %p148 = scmp.eq.s32.totalorder %s147, 0
    %s150 = sadd.s32 %s149, 1
    %s151 = scalar_select %p148, %s149, %s150
    %p154 = pneg %p148
    %p155 = scmp.eq.s32.totalorder %s11, 1
    %p156 = por %p154, %p155
    %p157 = scmp.ne.s32.totalorder %s149, %s152
    %p158 = scmp.eq.s32.totalorder %s11, 0
    %p159 = por %p157, %p158
    %p160 = scmp.ne.s32.totalorder %s149, %s152
    %p161 = scmp.eq.s32.totalorder %s16, 1
    %p162 = por %p160, %p161
    %p163 = scmp.ne.s32.totalorder %s152, %s153
    %p164 = scmp.eq.s32.totalorder %s16, 0
    %p165 = por %p163, %p164
    %p166 = scmp.ne.s32.totalorder %s152, %s153
    %p167 = scmp.eq.s32.totalorder %s17, 1
    %p168 = por %p166, %p167
    %p170 = scmp.ne.s32.totalorder %s153, %s169
    %p171 = scmp.eq.s32.totalorder %s17, 0
    %p172 = por %p170, %p171
    %p173 = scmp.le.s32.totalorder 1, %s11
    %p174 = scmp.lt.s32.totalorder %s11, 3
    %p175 = pnand %p173, %p174
    %p176 = pneg %p175
    // Predicated region
    $region9: #{global_context_sl.1} parent=5 // pred_check
      _
    $region10: #{global_context_sl.1} parent=5 // pred_check_branch
      %178 = sbr.rel (%p175) target = $region12
    $region11: #{global_context_sl.1} parent=5 // pred_region
      %s179 = ssub.s32 %s11, 1
      // Predicated region
      $region13: #{global_context_sl.1} parent=11 // pred_check
        %p180 = pneg %p81
      $region14: #{global_context_sl.1} parent=11 // pred_check_branch
        %182 = sbr.rel (%p180) target = $region16
      $region15: #{global_context_sl.1} parent=11 // pred_region
        _
      $region16: #{global_context_sl.1} parent=11 // pred_fallthru
        _
    $region12: #{global_context_sl.1} parent=5 // pred_fallthru
      _
    %p183 = scmp.lt.s32.totalorder %s11, 2
    // Predicated region
    $region17: #{global_context_sl.1} parent=5 // pred_check
      %p184 = pneg %p183
    $region18: #{global_context_sl.1} parent=5 // pred_check_branch
      %186 = sbr.rel (%p184) target = $region20
    $region19: #{global_context_sl.1} parent=5 // pred_region
      // Predicated region
      $region21: #{global_context_sl.1} parent=19 // pred_check
        %p187 = pneg %p54
      $region22: #{global_context_sl.1} parent=19 // pred_check_branch
        %189 = sbr.rel (%p187) target = $region24
      $region23: #{global_context_sl.1} parent=19 // pred_region
        %s190 = sadd.s32 %s19, %s20
        %s191 = smul.u32 2, %s190
        %p192 = scmp.lt.s32.totalorder %s18, 1
        %s193 = scalar_select %p192, %s18, 1
        %p194 = scmp.lt.s32.totalorder %s191, 1
        %s195 = scalar_select %p194, %s191, 1
        %s196 = smul.addr %s193, 2
        %s197 = sadd.s32 %s195, %s196
        %s198 = smul.addr %s197, 4
        %s199 = scalar_lea.vmem %s0, %s198
        %s200 = sadd.s32 %s19, %s20
        %s201 = smul.u32 2, %s200
      $region24: #{global_context_sl.1} parent=19 // pred_fallthru
        _
    $region20: #{global_context_sl.1} parent=5 // pred_fallthru
      _
    %p202 = scmp.le.s32.totalorder 1, %s11
    %p203 = scmp.lt.s32.totalorder %s11, 3
    %p204 = pnand %p202, %p203
    %p205 = pneg %p204
    // Predicated region
    $region25: #{global_context_sl.1} parent=5 // pred_check
      _
    $region26: #{global_context_sl.1} parent=5 // pred_check_branch
      %207 = sbr.rel (%p204) target = $region28
    $region27: #{global_context_sl.1} parent=5 // pred_region
      %s208 = ssub.s32 %s11, 1
      %s209 = sadd.s32 %s22, %s23
      %s210 = smul.u32 2, %s209
      %p211 = scmp.lt.s32.totalorder %s21, 1
      %s212 = scalar_select %p211, %s21, 1
      %p213 = scmp.lt.s32.totalorder %s210, 1
      %s214 = scalar_select %p213, %s210, 1
      %s215 = smul.addr %s212, 2
      %s216 = sadd.s32 %s214, %s215
      %s217 = smul.addr %s216, 4
      %s218 = scalar_lea.vmem %s0, %s217
      %p219 = pneg %p60
      %p220 = pneg %p57
      %p221 = pneg %p81
      %p222 = pneg %p78
      %p223 = pneg %p109
      %p224 = pneg %p106
      %p225 = scmp.lt.s32.totalorder %s21, 1
      %s226 = scalar_select %p225, %s21, 1
      %p227 = scmp.lt.s32.totalorder %s22, 0
      %s228 = scalar_select %p227, %s22, 0
      %s229 = sadd.s32 %s228, %s226
      %s230 = smul.addr %s229, 4
      %s231 = scalar_lea.vmem %s2, %s230
      %p232 = pneg %p137
      %p233 = pneg %p134
      %p234 = scmp.lt.s32.totalorder %s21, 1
      %s235 = scalar_select %p234, %s21, 1
      %p236 = scmp.lt.s32.totalorder %s22, 0
      %s237 = scalar_select %p236, %s22, 0
      %s238 = sadd.s32 %s237, %s235
      %s239 = scalar_lea.vmem %s3, %s238
      %p240 = pneg %p165
      %p241 = pneg %p162
      %p242 = scmp.lt.s32.totalorder %s21, 1
      %s243 = scalar_select %p242, %s21, 1
      %p244 = scmp.lt.s32.totalorder %s22, 0
      %s245 = scalar_select %p244, %s22, 0
      %s246 = sadd.s32 %s245, %s243
      %s247 = scalar_lea.vmem %s4, %s246
      %s248 = sadd.s32 %s22, %s23
      %s249 = smul.u32 2, %s248
      %p250 = scmp.lt.s32.totalorder %s21, 1
      %s251 = scalar_select %p250, %s21, 1
      %p252 = scmp.lt.s32.totalorder %s249, 1
      %s253 = scalar_select %p252, %s249, 1
      %s254 = smul.addr %s251, 2
      %s255 = sadd.s32 %s253, %s254
      %s256 = smul.addr %s255, 4
      %s257 = scalar_lea.vmem %s0, %s256
      %s258 = sadd.s32 %s22, %s23
      %s259 = smul.u32 2, %s258
      %p260 = scmp.lt.s32.totalorder %s21, 1
      %s261 = scalar_select %p260, %s21, 1
      %p262 = scmp.lt.s32.totalorder %s22, 0
      %s263 = scalar_select %p262, %s22, 0
      %s264 = sadd.s32 %s263, %s261
      %s265 = smul.addr %s264, 4
      %s266 = scalar_lea.vmem %s2, %s265
      %p267 = scmp.lt.s32.totalorder %s21, 1
      %s268 = scalar_select %p267, %s21, 1
      %p269 = scmp.lt.s32.totalorder %s22, 0
      %s270 = scalar_select %p269, %s22, 0
      %s271 = sadd.s32 %s270, %s268
      %s272 = scalar_lea.vmem %s3, %s271
      %p273 = scmp.lt.s32.totalorder %s21, 1
      %s274 = scalar_select %p273, %s21, 1
      %p275 = scmp.lt.s32.totalorder %s22, 0
      %s276 = scalar_select %p275, %s22, 0
      %s277 = sadd.s32 %s276, %s274
      %s278 = scalar_lea.vmem %s4, %s277
      %p279 = scmp.eq.s32.totalorder %s23, 0
      // Predicated region
      $region29: #{global_context_sl.1} parent=27 // pred_check
        %p280 = pneg %p279
      $region30: #{global_context_sl.1} parent=27 // pred_check_branch
        %282 = sbr.rel (%p280) target = $region32
      $region31: #{global_context_sl.1} parent=27 // pred_region
        %vm283 = vcmask 0
        %284 = vst.msk [vmem:[#allocation2] sm:$0x1] %vm283, -inf
        %285 = vst.msk [vmem:[#allocation3] sm:$0x1] %vm283, 0.0
        %vm286 = vcmask 3072
        %287 = vst.msk [vmem:[#allocation4] sm:$0xf] %vm286, 0.0
      $region32: #{global_context_sl.1} parent=27 // pred_fallthru
        _
      %v288 = vld [vmem:[%s257] sm:$0xff]
      %v289 = vld [vmem:[%s1] sm:$0xf]
      %291 = vset.pattern.permute.xlu0 0
      %292 = vperm.xlu0 %291, %v289
      %v293 = vpop.permute.xlu0 %292
      %v295 = vunpack.c.l.s4 839922192
      %v296 = vunpack.c.0.s8 %v295
      %v297 = vlaneseq
      %v298 = vshrl.u32 %v297, 7
      %v299 = vsub.s32 %v296, %v298
      %v300 = vrot.slane %v293, %v299
      %v302 = vmul.f32 %v288, %v300
      %v304 = vcombine.high %v302, %v302
      %vm306 = vcmask 1043456
      %v307 = vsel %vm306, %v302, 0.0
      %v308 = vrot.slane %v307, 4
      %v309 = vadd.f32 %v307, %v308
      %v310 = vrot.slane %v309, 2
      %v311 = vadd.f32 %v309, %v310
      %v312 = vrot.slane %v311, 1
      %v313 = vadd.f32 %v311, %v312
      %v314 = vsel %vm306, %v304, 0.0
      %v315 = vrot.slane %v314, 4
      %v316 = vadd.f32 %v314, %v315
      %v317 = vrot.slane %v316, 2
      %v318 = vadd.f32 %v316, %v317
      %v319 = vrot.slane %v318, 1
      %v320 = vadd.f32 %v318, %v319
      %v321 = vld [vmem:[#allocation2] sm:$0x1]
      %v322 = vmax.f32 %v313, %v320
      %323 = vmax.xlane.f32.xlu0 %v322
      %v324 = vpop.xlane.xlu0 %323
      %v325 = vmax.f32 %v321, %v324
      %v326 = vsub.f32 %v321, %v325
      %v327 = vmul.f32 %v326, 1.442695
      %v328 = vpow.pop %v327
      %330 = vset.pattern.permute.xlu0 0
      %331 = vperm.xlu0 %330, %v325
      %v332 = vpop.permute.xlu0 %331
      %v334 = vlaneseq
      %v335 = vshrl.u32 %v334, 7
      %v336 = vsub.s32 0, %v335
      %v337 = vrot.slane %v332, %v336
      %v338 = vsub.f32 %v313, %v337
      %v339 = vsub.f32 %v320, %v337
      %v340 = vmul.f32 %v338, 1.442695
      %v341 = vpow.pop %v340
      %v342 = vmul.f32 %v339, 1.442695
      %v343 = vpow.pop %v342
      %v344 = vld [vmem:[#allocation3] sm:$0x1]
      %v345 = vmul.f32 %v328, %v344
      %v346 = vadd.f32 %v341, %v343
      %347 = vadd.xlane.f32.xlu0 %v346
      %v348 = vpop.xlane.xlu0 %347
      %v349 = vadd.f32 %v345, %v348
      %vm350 = vcmask 0
      %351 = vst.msk [vmem:[#allocation3] sm:$0x1] %vm350, %v349
      %v354 = vcombine.low %v341, %v343
      %v356 = vmul.f32 %v288, %v354
      %v358 = vcombine.high %v356, %v356
      %v360 = vsel %vm306, %v356, 0.0
      %v361 = vsel %vm306, %v358, 0.0
      %v362 = vadd.f32 %v360, %v361
      %363 = vadd.xlane.f32.xlu0 %v362
      %v364 = vpop.xlane.xlu0 %363
      %v365 = vld [vmem:[#allocation4] sm:$0xf]
      %v367 = vlaneseq
      %v368 = vshrl.u32 %v367, 7
      %v369 = vsub.s32 0, %v368
      %v370 = vrot.slane %v328, %v369
      %v372 = vmul.f32 %v370, %v365
      %v373 = vadd.f32 %v372, %v364
      %vm374 = vcmask 3072
      %375 = vst.msk [vmem:[#allocation4] sm:$0xf] %vm374, %v373
      %376 = vst.msk [vmem:[#allocation2] sm:$0x1] %vm350, %v325
      // Predicated region
      $region33: #{global_context_sl.1} parent=27 // pred_check
        %p377 = pneg %p279
      $region34: #{global_context_sl.1} parent=27 // pred_check_branch
        %379 = sbr.rel (%p377) target = $region36
      $region35: #{global_context_sl.1} parent=27 // pred_region
        %v380 = vld [vmem:[#allocation4] sm:$0xf]
        %381 = vst.msk [vmem:[%s266] sm:$0xf] %vm374, %v380
        %v382 = vld [vmem:[#allocation2] sm:$0x1]
        %383 = vst.msk [vmem:[%s272] sm:$0x1] %vm350, %v382
        %v384 = vld [vmem:[#allocation3] sm:$0x1]
        %385 = vst.msk [vmem:[%s278] sm:$0x1] %vm350, %v384
      $region36: #{global_context_sl.1} parent=27 // pred_fallthru
        _
      %p386 = scmp.lt.s32.totalorder %s21, 1
      %s387 = scalar_select %p386, %s21, 1
      %p388 = scmp.lt.s32.totalorder %s22, 0
      %s389 = scalar_select %p388, %s22, 0
      %s390 = sadd.s32 %s389, %s387
      %s391 = smul.addr %s390, 4
      %s392 = scalar_lea.vmem %s2, %s391
      %p393 = scmp.lt.s32.totalorder %s21, 1
      %s394 = scalar_select %p393, %s21, 1
      %p395 = scmp.lt.s32.totalorder %s22, 0
      %s396 = scalar_select %p395, %s22, 0
      %s397 = sadd.s32 %s396, %s394
      %s398 = scalar_lea.vmem %s3, %s397
      %p399 = scmp.lt.s32.totalorder %s21, 1
      %s400 = scalar_select %p399, %s21, 1
      %p401 = scmp.lt.s32.totalorder %s22, 0
      %s402 = scalar_select %p401, %s22, 0
      %s403 = sadd.s32 %s402, %s400
      %s404 = scalar_lea.vmem %s4, %s403
      // Predicated region
      $region37: #{global_context_sl.1} parent=27 // pred_check
        %p405 = pneg %p106
      $region38: #{global_context_sl.1} parent=27 // pred_check_branch
        %407 = sbr.rel (%p405) target = $region40
      $region39: #{global_context_sl.1} parent=27 // pred_region
        _
      $region40: #{global_context_sl.1} parent=27 // pred_fallthru
        _
      // Predicated region
      $region41: #{global_context_sl.1} parent=27 // pred_check
        %p408 = pneg %p134
      $region42: #{global_context_sl.1} parent=27 // pred_check_branch
        %410 = sbr.rel (%p408) target = $region44
      $region43: #{global_context_sl.1} parent=27 // pred_region
        _
      $region44: #{global_context_sl.1} parent=27 // pred_fallthru
        _
      // Predicated region
      $region45: #{global_context_sl.1} parent=27 // pred_check
        %p411 = pneg %p162
      $region46: #{global_context_sl.1} parent=27 // pred_check_branch
        %413 = sbr.rel (%p411) target = $region48
      $region47: #{global_context_sl.1} parent=27 // pred_region
        _
      $region48: #{global_context_sl.1} parent=27 // pred_fallthru
        _
    $region28: #{global_context_sl.1} parent=5 // pred_fallthru
      _
    %p414 = scmp.le.s32.totalorder 2, %s11
    // Predicated region
    $region49: #{global_context_sl.1} parent=5 // pred_check
      %p415 = pneg %p414
    $region50: #{global_context_sl.1} parent=5 // pred_check_branch
      %417 = sbr.rel (%p415) target = $region52
    $region51: #{global_context_sl.1} parent=5 // pred_region
      %s418 = ssub.s32 %s11, 2
      // Predicated region
      $region53: #{global_context_sl.1} parent=51 // pred_check
        %p419 = pneg %p112
      $region54: #{global_context_sl.1} parent=51 // pred_check_branch
        %421 = sbr.rel (%p419) target = $region56
      $region55: #{global_context_sl.1} parent=51 // pred_region
        %p422 = scmp.lt.s32.totalorder %s24, 1
        %s423 = scalar_select %p422, %s24, 1
        %p424 = scmp.lt.s32.totalorder %s25, 0
        %s425 = scalar_select %p424, %s25, 0
        %s426 = sadd.s32 %s425, %s423
        %s427 = smul.addr %s426, 4
        %s428 = scalar_lea.vmem %s2, %s427
      $region56: #{global_context_sl.1} parent=51 // pred_fallthru
        _
      // Predicated region
      $region57: #{global_context_sl.1} parent=51 // pred_check
        %p429 = pneg %p140
      $region58: #{global_context_sl.1} parent=51 // pred_check_branch
        %431 = sbr.rel (%p429) target = $region60
      $region59: #{global_context_sl.1} parent=51 // pred_region
        %p432 = scmp.lt.s32.totalorder %s24, 1
        %s433 = scalar_select %p432, %s24, 1
        %p434 = scmp.lt.s32.totalorder %s25, 0
        %s435 = scalar_select %p434, %s25, 0
        %s436 = sadd.s32 %s435, %s433
        %s437 = scalar_lea.vmem %s3, %s436
      $region60: #{global_context_sl.1} parent=51 // pred_fallthru
        _
      // Predicated region
      $region61: #{global_context_sl.1} parent=51 // pred_check
        %p438 = pneg %p168
      $region62: #{global_context_sl.1} parent=51 // pred_check_branch
        %440 = sbr.rel (%p438) target = $region64
      $region63: #{global_context_sl.1} parent=51 // pred_region
        %p441 = scmp.lt.s32.totalorder %s24, 1
        %s442 = scalar_select %p441, %s24, 1
        %p443 = scmp.lt.s32.totalorder %s25, 0
        %s444 = scalar_select %p443, %s25, 0
        %s445 = sadd.s32 %s444, %s442
        %s446 = scalar_lea.vmem %s4, %s445
      $region64: #{global_context_sl.1} parent=51 // pred_fallthru
        _
    $region52: #{global_context_sl.1} parent=5 // pred_fallthru
      _
  $region6: #{global_context_sl.1} parent=0 // loop_footer
    %s15 = sadd.s32 1, %s11
  $region7: #{global_context_sl.1} parent=0 // loop_footer_branch
    %10 = sbr.rel target = $region3
  $region8: #{global_context_sl.1} parent=0 // loop_exit
    _

</llo_original>
